<compile_context>
chip_gen: v7x
topology: tpu7x:2x2x1
jax: 0.10.0
libtpu: 0.0.40
codegen_flags: <defaults>
</compile_context>

<pallas_src>
import jax
import jax.numpy as jnp
from jax.experimental import pallas as pl
from jax.experimental.pallas import tpu as pltpu
from typing import NamedTuple

LANE = 128  # vreg lane width: feature dims are padded to a multiple of this


def _round_up(x, m):
    return ((x + m - 1) // m) * m


def _pad_to(a, target_shape):
    pads = [(0, t - s) for s, t in zip(a.shape, target_shape)]
    if any(p[1] for p in pads):
        return jnp.pad(a, pads)
    return a


def _vmem_limit_bytes():
    # Generation-aware scoped-VMEM limit: plenty of room on v5e/v6e (128 MiB
    # physical VMEM), but leave headroom below v7x's 64 MiB physical.
    mib = 1024 * 1024
    try:
        cap = int(pltpu.get_tpu_info().vmem_capacity_bytes)
    except Exception:  # conservative fallback if the query is unavailable
        cap = 128 * mib
    return int(max(32 * mib, min(cap - 16 * mib, 96 * mib)))


def _resident_spec(block_shape):
    # Weights/biases: constant index_map -> the block is DMA'd once and stays
    # resident across the whole batch grid.  pl.Buffered(1) requests a single
    # VMEM buffer (double-buffering a never-changing block only wastes VMEM).
    index_map = lambda i: (0,) * len(block_shape)
    try:
        return pl.BlockSpec(block_shape, index_map, pipeline_mode=pl.Buffered(1))
    except TypeError:  # very old JAX without BlockSpec.pipeline_mode
        return pl.BlockSpec(block_shape, index_map)


class MLPLayerParams(NamedTuple):
    w0_t: jax.Array   # [indim_p, outdim_p]  W0^T, zero-padded, bf16 (or f32)
    b0: jax.Array     # [1, outdim_p] f32
    w1_t: jax.Array   # [outdim_p, outdim_p] W1^T, zero-padded, bf16 (or f32)
    b1: jax.Array     # [1, outdim_p] f32
    indim: int
    outdim: int


def prepare_mlp_params(w0, b0, w1, b1, *, use_bf16=True):
    """One-time reformat of torch.nn.Linear parameters (transpose + lane-pad + cast).

    Hoisted out of the per-forward path so repeated eval-mode calls pay zero HBM
    traffic for weight reformatting.  use_bf16=False keeps f32 MXU operands for
    precision-sensitive callers (exact f32 Linear semantics, slower MXU path).
    """
    outdim, indim = w0.shape
    indim_p = _round_up(indim, LANE)
    outdim_p = _round_up(outdim, LANE)
    wdt = jnp.bfloat16 if use_bf16 else jnp.float32
    w0_t = _pad_to(w0.T.astype(jnp.float32), (indim_p, outdim_p)).astype(wdt)
    w1_t = _pad_to(w1.T.astype(jnp.float32), (outdim_p, outdim_p)).astype(wdt)
    b0_p = _pad_to(b0.reshape(1, -1).astype(jnp.float32), (1, outdim_p))
    b1_p = _pad_to(b1.reshape(1, -1).astype(jnp.float32), (1, outdim_p))
    return MLPLayerParams(w0_t, b0_p, w1_t, b1_p, indim, outdim)


def mlp_layer_kernel(x_ref, w0_ref, b0_ref, w1_ref, b1_ref, o_ref):
    # f32 activations are cast to the MXU operand dtype here (in-kernel VPU pack,
    # hidden under DMA/MXU) instead of in a separate wrapper pass over HBM.
    xm = x_ref[...].astype(w0_ref.dtype)
    # Single f32 accumulator: acc == emb; the second matmul is added into it.
    acc = jnp.dot(xm, w0_ref[...], preferred_element_type=jnp.float32) + b0_ref[...]
    h = jnp.tanh(acc).astype(w1_ref.dtype)                # EUP tanh in f32, then pack
    acc = acc + b1_ref[...] + jnp.dot(h, w1_ref[...],
                                      preferred_element_type=jnp.float32)
    o_ref[...] = acc.astype(o_ref.dtype)                  # residual already folded in


def mlp_layer_forward(x, params: MLPLayerParams, *, tile_m=512,
                      out_dtype=jnp.float32):
    """Eval-mode MLPLayer forward (num_layers=2, dropout=0.0, batchnorm=False).

    x: [n, indim] float32, params from prepare_mlp_params(); returns [n, outdim].
    """
    n, indim = x.shape
    assert indim == params.indim, (indim, params.indim)
    indim_p, outdim_p = params.w0_t.shape

    # Batch tiling: default 512 rows (big blocks reach ~85%+ of the HBM roofline),
    # clamped so that (a) there are >= 2 grid steps whenever n > 16 (keeps both
    # v7x TensorCores busy on the "parallel" axis) and (b) ragged batches waste at
    # most one tile of padded work.  Kept a multiple of 16 (bf16 sublane tile).
    tile_m = max(16, min(tile_m, _round_up(n, 16)))
    if n > 16:
        tile_m = min(tile_m, _round_up((n + 1) // 2, 16))
    tile_m = _round_up(tile_m, 16)
    n_p = _round_up(n, tile_m)

    # x stays in native f32 (no wrapper-side cast pass).  Zero-padding is applied
    # only when shapes are not already lane/tile aligned; on aligned shapes this
    # is the identity and the wrapper never touches x.
    x_p = _pad_to(x.astype(jnp.float32), (n_p, indim_p))

    grid = (n_p // tile_m,)

    out_p = pl.pallas_call(
        mlp_layer_kernel,
        out_shape=jax.ShapeDtypeStruct((n_p, outdim_p), out_dtype),
        grid_spec=pltpu.PrefetchScalarGridSpec(
            num_scalar_prefetch=0,
            grid=grid,
            in_specs=[
                pl.BlockSpec((tile_m, indim_p), lambda i: (i, 0)),   # x tile (f32)
                _resident_spec((indim_p, outdim_p)),                 # W0^T resident
                _resident_spec((1, outdim_p)),                       # b0
                _resident_spec((outdim_p, outdim_p)),                # W1^T resident
                _resident_spec((1, outdim_p)),                       # b1
            ],
            out_specs=pl.BlockSpec((tile_m, outdim_p), lambda i: (i, 0)),
        ),
        compiler_params=pltpu.CompilerParams(
            dimension_semantics=("parallel",),
            vmem_limit_bytes=_vmem_limit_bytes(),
        ),
    )(x_p, params.w0_t, params.b0, params.w1_t, params.b1)

    # Slice away batch / feature padding.
    return out_p[:n, :params.outdim]


if __name__ == "__main__":
    key = jax.random.PRNGKey(0)

    def make_raw_params(k, indim, outdim):
        k_w0, k_b0, k_w1, k_b1 = jax.random.split(k, 4)
        w0 = jax.random.normal(k_w0, (outdim, indim), jnp.float32) * 0.1
        b0 = jax.random.normal(k_b0, (outdim,), jnp.float32) * 0.1
        w1 = jax.random.normal(k_w1, (outdim, outdim), jnp.float32) * 0.1
        b1 = jax.random.normal(k_b1, (outdim,), jnp.float32) * 0.1
        return w0, b0, w1, b1

    def ref_forward(x, w0, b0, w1, b1):
        # Pure-JAX reference with the same operand precision as the kernel
        # (bf16 MXU operands, f32 accumulation / tanh / residual).
        xb = x.astype(jnp.bfloat16)
        emb = jnp.dot(xb, w0.T.astype(jnp.bfloat16),
                      preferred_element_type=jnp.float32) + b0
        h = jnp.tanh(emb).astype(jnp.bfloat16)
        return emb + b1 + jnp.dot(h, w1.T.astype(jnp.bfloat16),
                                  preferred_element_type=jnp.float32)

    cases = [
        (512, 128, 128),  # lane-aligned: zero wrapper passes over x, 2 parallel steps
        (77, 48, 72),     # ragged batch + non-128 features: padding path
    ]
    k_data, k_par = jax.random.split(key)
    for idx, (n, indim, outdim) in enumerate(cases):
        kx = jax.random.fold_in(k_data, idx)
        kp = jax.random.fold_in(k_par, idx)
        x = jax.random.normal(kx, (n, indim), jnp.float32)
        w0, b0, w1, b1 = make_raw_params(kp, indim, outdim)

        params = prepare_mlp_params(w0, b0, w1, b1)       # one-time reformat, reused
        out = jax.block_until_ready(mlp_layer_forward(x, params))
        ref = ref_forward(x, w0, b0, w1, b1)

        assert out.shape == (n, outdim)
        err = float(jnp.max(jnp.abs(out - ref)))
        assert jnp.allclose(out, ref, atol=2e-3, rtol=2e-3), f"max abs err {err}"

    print("KERNEL_OK")
</pallas_src>

<mosaic_0001>
module attributes {stable_mosaic.version = 11 : i64} {
  func.func @mlp_layer_kernel(%arg0: i32, %arg1: memref<256x128xf32, #tpu.memory_space<vmem>>, %arg2: memref<128x128xbf16, #tpu.memory_space<vmem>>, %arg3: memref<1x128xf32, #tpu.memory_space<vmem>>, %arg4: memref<128x128xbf16, #tpu.memory_space<vmem>>, %arg5: memref<1x128xf32, #tpu.memory_space<vmem>>, %arg6: memref<256x128xf32, #tpu.memory_space<vmem>>) attributes {dimension_semantics = [#tpu.dimension_semantics<parallel>], iteration_bounds = array<i64: 2>, scalar_prefetch = 0 : i64, scratch_operands = 0 : i64, tpu.core_type = #tpu.core_type<tc>, window_params = [{transform_indices = @transform_0, window_bounds = array<i64: 256, 128>}, {pipeline_mode = #tpu.pipeline_mode<synchronous>, transform_indices = @transform_1, window_bounds = array<i64: 128, 128>}, {pipeline_mode = #tpu.pipeline_mode<synchronous>, transform_indices = @transform_2, window_bounds = array<i64: 1, 128>}, {pipeline_mode = #tpu.pipeline_mode<synchronous>, transform_indices = @transform_3, window_bounds = array<i64: 128, 128>}, {pipeline_mode = #tpu.pipeline_mode<synchronous>, transform_indices = @transform_4, window_bounds = array<i64: 1, 128>}, {transform_indices = @transform_5, window_bounds = array<i64: 256, 128>}]} {
    %c0 = arith.constant 0 : index
    %c0_0 = arith.constant 0 : index
    %0 = vector.load %arg1[%c0, %c0_0] : memref<256x128xf32, #tpu.memory_space<vmem>>, vector<256x128xf32>
    %1 = arith.truncf %0 : vector<256x128xf32> to vector<256x128xbf16>
    %c0_1 = arith.constant 0 : index
    %c0_2 = arith.constant 0 : index
    %2 = vector.load %arg2[%c0_1, %c0_2] : memref<128x128xbf16, #tpu.memory_space<vmem>>, vector<128x128xbf16>
    %cst = arith.constant dense<0.000000e+00> : vector<256x128xf32>
    %3 = tpu.matmul %1, %2, %cst {dimension_numbers = #tpu.dot_dimension_numbers<[1], [0], [0], [1], [0, 0, 1, 1], [], []>} : vector<256x128xbf16>, vector<128x128xbf16>, vector<256x128xf32> -> vector<256x128xf32>
    %c0_3 = arith.constant 0 : index
    %c0_4 = arith.constant 0 : index
    %4 = vector.load %arg3[%c0_3, %c0_4] : memref<1x128xf32, #tpu.memory_space<vmem>>, vector<1x128xf32>
    %5 = vector.broadcast %4 : vector<1x128xf32> to vector<256x128xf32>
    %6 = arith.addf %3, %5 : vector<256x128xf32>
    %7 = math.tanh %6 : vector<256x128xf32>
    %8 = arith.truncf %7 : vector<256x128xf32> to vector<256x128xbf16>
    %c0_5 = arith.constant 0 : index
    %c0_6 = arith.constant 0 : index
    %9 = vector.load %arg5[%c0_5, %c0_6] : memref<1x128xf32, #tpu.memory_space<vmem>>, vector<1x128xf32>
    %10 = vector.broadcast %9 : vector<1x128xf32> to vector<256x128xf32>
    %11 = arith.addf %6, %10 : vector<256x128xf32>
    %c0_7 = arith.constant 0 : index
    %c0_8 = arith.constant 0 : index
    %12 = vector.load %arg4[%c0_7, %c0_8] : memref<128x128xbf16, #tpu.memory_space<vmem>>, vector<128x128xbf16>
    %cst_9 = arith.constant dense<0.000000e+00> : vector<256x128xf32>
    %13 = tpu.matmul %8, %12, %cst_9 {dimension_numbers = #tpu.dot_dimension_numbers<[1], [0], [0], [1], [0, 0, 1, 1], [], []>} : vector<256x128xbf16>, vector<128x128xbf16>, vector<256x128xf32> -> vector<256x128xf32>
    %14 = arith.addf %11, %13 : vector<256x128xf32>
    %c0_10 = arith.constant 0 : index
    %c0_11 = arith.constant 0 : index
    %15 = vector.load %arg6[%c0_10, %c0_11] : memref<256x128xf32, #tpu.memory_space<vmem>>, vector<256x128xf32>
    tpu.vector_store %arg6[%c0_10, %c0_11], %14 {strides = array<i32>} : memref<256x128xf32, #tpu.memory_space<vmem>>, vector<256x128xf32>,
    return
  }
  func.func @transform_0(%arg0: i32) -> (i32, i32) {
    %c0_i32 = arith.constant 0 : i32
    %c0_i32_0 = arith.constant 0 : i32
    return %arg0, %c0_i32 : i32, i32
  }
  func.func @transform_1(%arg0: i32) -> (i32, i32) {
    %c0_i32 = arith.constant 0 : i32
    %c0_i32_0 = arith.constant 0 : i32
    %c0_i32_1 = arith.constant 0 : i32
    return %c0_i32, %c0_i32_0 : i32, i32
  }
  func.func @transform_2(%arg0: i32) -> (i32, i32) {
    %c0_i32 = arith.constant 0 : i32
    %c0_i32_0 = arith.constant 0 : i32
    %c0_i32_1 = arith.constant 0 : i32
    return %c0_i32, %c0_i32_0 : i32, i32
  }
  func.func @transform_3(%arg0: i32) -> (i32, i32) {
    %c0_i32 = arith.constant 0 : i32
    %c0_i32_0 = arith.constant 0 : i32
    %c0_i32_1 = arith.constant 0 : i32
    return %c0_i32, %c0_i32_0 : i32, i32
  }
  func.func @transform_4(%arg0: i32) -> (i32, i32) {
    %c0_i32 = arith.constant 0 : i32
    %c0_i32_0 = arith.constant 0 : i32
    %c0_i32_1 = arith.constant 0 : i32
    return %c0_i32, %c0_i32_0 : i32, i32
  }
  func.func @transform_5(%arg0: i32) -> (i32, i32) {
    %c0_i32 = arith.constant 0 : i32
    %c0_i32_0 = arith.constant 0 : i32
    return %arg0, %c0_i32 : i32, i32
  }
}

</mosaic_0001>

<llo_original>
// kernel: tpu_custom_call.1
$region0: #{tpu_custom_call.1}
  #allocation0 [shape = 'u32[]', space=smem, size = 0x4, offset = 0x4, fixed_abs, tag = 'smem constant byte address 0x4 - core index']
  #allocation1 [shape = 'u32[144,128]{1,0:T(1,128)}', space=vmem, size = 0x12000, scoped, tag = 'internal scratch']
  %s0 = inlined_call_operand.hbm [shape: f32[512,128], index: 0, kind: input, shape index: {}]
  %s1 = inlined_call_operand.hbm [shape: bf16[128,128], index: 1, kind: input, shape index: {}]
  %s2 = inlined_call_operand.hbm [shape: f32[1,128], index: 2, kind: input, shape index: {}]
  %s3 = inlined_call_operand.hbm [shape: bf16[128,128], index: 3, kind: input, shape index: {}]
  %s4 = inlined_call_operand.hbm [shape: f32[1,128], index: 4, kind: input, shape index: {}]
  %s5 = inlined_call_operand.hbm [shape: f32[512,128], index: 5, kind: output, shape index: {}]
  %s6 = sld [smem:[#allocation0]]
  $region73: #{tpu_custom_call.1} parent=0
    _
  %s8 = ssub.s32 1, %s6
  %s9 = scalar_select 0, %s8, %s6
  $region1: #{tpu_custom_call.1} parent=0
    #allocation2 [shape = 'u8[262144]{0}', space=vmem, size = 0x40000, scoped, tag = 'input window, operand 0']
    #allocation3 [shape = 's32[2]{0}', space=sflag, size = 0x8, scoped, tag = 'scoped memory for tpu_custom_call.1']
    #allocation4 [shape = 's32[2]{0}', space=sflag, size = 0x8, scoped, tag = 'scoped memory for tpu_custom_call.1']
    #allocation5 [shape = 'u8[32768]{0}', space=vmem, size = 0x8000, scoped, tag = 'input window, operand 1, single buffered']
    #allocation6 [shape = 's32[1]{0}', space=sflag, size = 0x4, scoped, tag = 'scoped memory for tpu_custom_call.1']
    #allocation7 [shape = 'u8[512]{0}', space=vmem, size = 0x400, scoped, tag = 'input window, operand 2, single buffered']
    #allocation8 [shape = 'u8[32768]{0}', space=vmem, size = 0x8000, scoped, tag = 'input window, operand 3, single buffered']
    #allocation9 [shape = 's32[1]{0}', space=sflag, size = 0x4, scoped, tag = 'scoped memory for tpu_custom_call.1']
    #allocation10 [shape = 'u8[512]{0}', space=vmem, size = 0x400, scoped, tag = 'input window, operand 4, single buffered']
    #allocation11 [shape = 'u8[262144]{0}', space=vmem, size = 0x40000, scoped, tag = 'output window, operand 0']
    %10 = vsyncpa [#allocation3], 0
    %s11 = scalar_lea.sflag [#allocation3], 1
    %12 = vsyncpa %s11, 0
    %13 = vsyncpa [#allocation6], 0
    %14 = vsyncpa [#allocation9], 0
    %15 = vsyncpa [#allocation4], 0
    %s16 = scalar_lea.sflag [#allocation4], 1
    %17 = vsyncpa %s16, 0
    loop: start=0, step=1, limit=4
    $region2: #{tpu_custom_call.1} parent=1 // loop_pre_header
      _
    $region3: #{tpu_custom_call.1} parent=1 // loop_header
      %s19 = sphi 0, %s23
      %p20 = scmp.ge.s32.totalorder %s19, 4
      %s29 = sphi 0, %s31
      %s32 = sphi 0, %s29
      %s33 = sphi 0, %s32
      %s49 = sphi 0, %s33
      %s53 = sphi 0, %s53
      %s55 = sphi 0, %s53
      %s56 = sphi 0, %s55
      %s70 = sphi 0, %s56
      %s74 = sphi 0, %s74
      %s76 = sphi 0, %s74
      %s77 = sphi 0, %s76
      %s91 = sphi 0, %s77
      %s95 = sphi 0, %s95
      %s97 = sphi 0, %s95
      %s98 = sphi 0, %s97
      %s112 = sphi 0, %s98
      %s116 = sphi 0, %s116
      %s118 = sphi 0, %s116
      %s119 = sphi 0, %s118
      %s133 = sphi 0, %s119
      %s139 = sphi 0, %s141
      %s142 = sphi 0, %s139
      %s143 = sphi 0, %s142
      %s159 = sphi 0, %s143
    $region4: #{tpu_custom_call.1} parent=1 // loop_header_branch
      %22 = sbr.rel (%p20) target = $region8
    $region5: #{tpu_custom_call.1} parent=1 // loop_body
      %s24 = ssub.s32 %s19, 1
      %s25 = ssub.s32 %s19, 2
      %s26 = sadd.s32 %s19, 1
      %s27 = ssub.s32 %s19, %s26
      %p28 = scmp.eq.s32.totalorder %s27, 0
      %s30 = sadd.s32 %s29, 1
      %s31 = scalar_select %p28, %s29, %s30
      %p34 = pneg %p28
      %p35 = scmp.eq.s32.totalorder %s19, 1
      %p36 = por %p34, %p35
      %p37 = scmp.ne.s32.totalorder %s29, %s32
      %p38 = scmp.eq.s32.totalorder %s19, 0
      %p39 = por %p37, %p38
      %p40 = scmp.ne.s32.totalorder %s29, %s32
      %p41 = scmp.eq.s32.totalorder %s24, 1
      %p42 = por %p40, %p41
      %p43 = scmp.ne.s32.totalorder %s32, %s33
      %p44 = scmp.eq.s32.totalorder %s24, 0
      %p45 = por %p43, %p44
      %p46 = scmp.ne.s32.totalorder %s32, %s33
      %p47 = scmp.eq.s32.totalorder %s25, 1
      %p48 = por %p46, %p47
      %p50 = scmp.ne.s32.totalorder %s33, %s49
      %p51 = scmp.eq.s32.totalorder %s25, 0
      %p52 = por %p50, %p51
      %s54 = sadd.s32 %s53, 1
      %p57 = scmp.eq.s32.totalorder %s19, 1
      %p58 = scmp.ne.s32.totalorder %s53, %s55
      %p59 = scmp.eq.s32.totalorder %s19, 0
      %p60 = por %p58, %p59
      %p61 = scmp.ne.s32.totalorder %s53, %s55
      %p62 = scmp.eq.s32.totalorder %s24, 1
      %p63 = por %p61, %p62
      %p64 = scmp.ne.s32.totalorder %s55, %s56
      %p65 = scmp.eq.s32.totalorder %s24, 0
      %p66 = por %p64, %p65
      %p67 = scmp.ne.s32.totalorder %s55, %s56
      %p68 = scmp.eq.s32.totalorder %s25, 1
      %p69 = por %p67, %p68
      %p71 = scmp.ne.s32.totalorder %s56, %s70
      %p72 = scmp.eq.s32.totalorder %s25, 0
      %p73 = por %p71, %p72
      %s75 = sadd.s32 %s74, 1
      %p78 = scmp.eq.s32.totalorder %s19, 1
      %p79 = scmp.ne.s32.totalorder %s74, %s76
      %p80 = scmp.eq.s32.totalorder %s19, 0
      %p81 = por %p79, %p80
      %p82 = scmp.ne.s32.totalorder %s74, %s76
      %p83 = scmp.eq.s32.totalorder %s24, 1
      %p84 = por %p82, %p83
      %p85 = scmp.ne.s32.totalorder %s76, %s77
      %p86 = scmp.eq.s32.totalorder %s24, 0
      %p87 = por %p85, %p86
      %p88 = scmp.ne.s32.totalorder %s76, %s77
      %p89 = scmp.eq.s32.totalorder %s25, 1
      %p90 = por %p88, %p89
      %p92 = scmp.ne.s32.totalorder %s77, %s91
      %p93 = scmp.eq.s32.totalorder %s25, 0
      %p94 = por %p92, %p93
      %s96 = sadd.s32 %s95, 1
      %p99 = scmp.eq.s32.totalorder %s19, 1
      %p100 = scmp.ne.s32.totalorder %s95, %s97
      %p101 = scmp.eq.s32.totalorder %s19, 0
      %p102 = por %p100, %p101
      %p103 = scmp.ne.s32.totalorder %s95, %s97
      %p104 = scmp.eq.s32.totalorder %s24, 1
      %p105 = por %p103, %p104
      %p106 = scmp.ne.s32.totalorder %s97, %s98
      %p107 = scmp.eq.s32.totalorder %s24, 0
      %p108 = por %p106, %p107
      %p109 = scmp.ne.s32.totalorder %s97, %s98
      %p110 = scmp.eq.s32.totalorder %s25, 1
      %p111 = por %p109, %p110
      %p113 = scmp.ne.s32.totalorder %s98, %s112
      %p114 = scmp.eq.s32.totalorder %s25, 0
      %p115 = por %p113, %p114
      %s117 = sadd.s32 %s116, 1
      %p120 = scmp.eq.s32.totalorder %s19, 1
      %p121 = scmp.ne.s32.totalorder %s116, %s118
      %p122 = scmp.eq.s32.totalorder %s19, 0
      %p123 = por %p121, %p122
      %p124 = scmp.ne.s32.totalorder %s116, %s118
      %p125 = scmp.eq.s32.totalorder %s24, 1
      %p126 = por %p124, %p125
      %p127 = scmp.ne.s32.totalorder %s118, %s119
      %p128 = scmp.eq.s32.totalorder %s24, 0
      %p129 = por %p127, %p128
      %p130 = scmp.ne.s32.totalorder %s118, %s119
      %p131 = scmp.eq.s32.totalorder %s25, 1
      %p132 = por %p130, %p131
      %p134 = scmp.ne.s32.totalorder %s119, %s133
      %p135 = scmp.eq.s32.totalorder %s25, 0
      %p136 = por %p134, %p135
      %s137 = ssub.s32 %s19, %s26
      %p138 = scmp.eq.s32.totalorder %s137, 0
      %s140 = sadd.s32 %s139, 1
      %s141 = scalar_select %p138, %s139, %s140
      %p144 = pneg %p138
      %p145 = scmp.eq.s32.totalorder %s19, 1
      %p146 = por %p144, %p145
      %p147 = scmp.ne.s32.totalorder %s139, %s142
      %p148 = scmp.eq.s32.totalorder %s19, 0
      %p149 = por %p147, %p148
      %p150 = scmp.ne.s32.totalorder %s139, %s142
      %p151 = scmp.eq.s32.totalorder %s24, 1
      %p152 = por %p150, %p151
      %p153 = scmp.ne.s32.totalorder %s142, %s143
      %p154 = scmp.eq.s32.totalorder %s24, 0
      %p155 = por %p153, %p154
      %p156 = scmp.ne.s32.totalorder %s142, %s143
      %p157 = scmp.eq.s32.totalorder %s25, 1
      %p158 = por %p156, %p157
      %p160 = scmp.ne.s32.totalorder %s143, %s159
      %p161 = scmp.eq.s32.totalorder %s25, 0
      %p162 = por %p160, %p161
      %p163 = scmp.le.s32.totalorder 1, %s19
      %p164 = scmp.lt.s32.totalorder %s19, 3
      %p165 = pnand %p163, %p164
      %p166 = pneg %p165
      // Predicated region
      $region9: #{tpu_custom_call.1} parent=5 // pred_check
        _
      $region10: #{tpu_custom_call.1} parent=5 // pred_check_branch
        %168 = sbr.rel (%p165) target = $region12
      $region11: #{tpu_custom_call.1} parent=5 // pred_region
        %s169 = ssub.s32 %s19, 1
        // Predicated region
        $region13: #{tpu_custom_call.1} parent=11 // pred_check
          %p170 = pneg %p66
        $region14: #{tpu_custom_call.1} parent=11 // pred_check_branch
          %172 = sbr.rel (%p170) target = $region16
        $region15: #{tpu_custom_call.1} parent=11 // pred_region
          %s174 = ssub.s32 1024, 1024
          %175 = vsyncadd [#allocation6], %s174
          %s176 = sshll.u32 [#allocation5], 4
          %s177 = int_to_ptr.vmem [resolvable:$true] %s176
          %182 = dma.hbm_to_vmem [thread:$0]  %s1, 1024, %s177, [#allocation6], 64, 64, 4
        $region16: #{tpu_custom_call.1} parent=11 // pred_fallthru
          _
        // Predicated region
        $region17: #{tpu_custom_call.1} parent=11 // pred_check
          %p183 = pneg %p87
        $region18: #{tpu_custom_call.1} parent=11 // pred_check_branch
          %185 = sbr.rel (%p183) target = $region20
        $region19: #{tpu_custom_call.1} parent=11 // pred_region
          %s187 = ssub.s32 16, 16
          %188 = vsyncadd [#allocation6], %s187
          %s190 = sshll.u32 [#allocation7], 4
          %s191 = int_to_ptr.vmem [resolvable:$true] %s190
          %193 = dma.hbm_to_vmem [thread:$0]  %s2, 16, %s191, [#allocation6]
        $region20: #{tpu_custom_call.1} parent=11 // pred_fallthru
          _
        // Predicated region
        $region21: #{tpu_custom_call.1} parent=11 // pred_check
          %p194 = pneg %p108
        $region22: #{tpu_custom_call.1} parent=11 // pred_check_branch
          %196 = sbr.rel (%p194) target = $region24
        $region23: #{tpu_custom_call.1} parent=11 // pred_region
          %s198 = ssub.s32 1024, 1024
          %199 = vsyncadd [#allocation9], %s198
          %s200 = sshll.u32 [#allocation8], 4
          %s201 = int_to_ptr.vmem [resolvable:$true] %s200
          %206 = dma.hbm_to_vmem [thread:$0]  %s3, 1024, %s201, [#allocation9], 64, 64, 4
        $region24: #{tpu_custom_call.1} parent=11 // pred_fallthru
          _
        // Predicated region
        $region25: #{tpu_custom_call.1} parent=11 // pred_check
          %p207 = pneg %p129
        $region26: #{tpu_custom_call.1} parent=11 // pred_check_branch
          %209 = sbr.rel (%p207) target = $region28
        $region27: #{tpu_custom_call.1} parent=11 // pred_region
          %s211 = ssub.s32 16, 16
          %212 = vsyncadd [#allocation9], %s211
          %s214 = sshll.u32 [#allocation10], 4
          %s215 = int_to_ptr.vmem [resolvable:$true] %s214
          %217 = dma.hbm_to_vmem [thread:$0]  %s4, 16, %s215, [#allocation9]
        $region28: #{tpu_custom_call.1} parent=11 // pred_fallthru
          _
      $region12: #{tpu_custom_call.1} parent=5 // pred_fallthru
        _
      %p218 = scmp.lt.s32.totalorder %s19, 2
      // Predicated region
      $region29: #{tpu_custom_call.1} parent=5 // pred_check
        %p219 = pneg %p218
      $region30: #{tpu_custom_call.1} parent=5 // pred_check_branch
        %221 = sbr.rel (%p219) target = $region32
      $region31: #{tpu_custom_call.1} parent=5 // pred_region
        // Predicated region
        $region33: #{tpu_custom_call.1} parent=31 // pred_check
          %p222 = pneg %p39
        $region34: #{tpu_custom_call.1} parent=31 // pred_check_branch
          %224 = sbr.rel (%p222) target = $region36
        $region35: #{tpu_custom_call.1} parent=31 // pred_region
          %s225 = sand.u32 %s29, 1
          %s226 = scalar_lea.sflag [#allocation3], %s225
          %s227 = sand.u32 %s29, 1
          %s228 = smul.addr %s227, 256
          %s229 = scalar_lea.vmem [#allocation2], %s228
          %s230 = smul.u32 32, %s19
          %s232 = ssub.s32 4096, 4096
          %233 = vsyncadd %s226, %s232
          %s234 = smul.addr %s230, 128
          %s235 = scalar_lea.hbm %s0, %s234
          %s236 = sshll.u32 %s229, 4
          %s237 = int_to_ptr.vmem [resolvable:$true] %s236
          %242 = dma.hbm_to_vmem [thread:$0]  %s235, 4096, %s237, %s226, 128, 128, 8
        $region36: #{tpu_custom_call.1} parent=31 // pred_fallthru
          _
      $region32: #{tpu_custom_call.1} parent=5 // pred_fallthru
        _
      %p243 = scmp.le.s32.totalorder 1, %s19
      %p244 = scmp.lt.s32.totalorder %s19, 3
      %p245 = pnand %p243, %p244
      %p246 = pneg %p245
      // Predicated region
      $region37: #{tpu_custom_call.1} parent=5 // pred_check
        _
      $region38: #{tpu_custom_call.1} parent=5 // pred_check_branch
        %248 = sbr.rel (%p245) target = $region40
      $region39: #{tpu_custom_call.1} parent=5 // pred_region
        %s249 = ssub.s32 %s19, 1
        %s250 = sand.u32 %s32, 1
        %s251 = scalar_lea.sflag [#allocation3], %s250
        %s252 = sand.u32 %s32, 1
        %s253 = smul.addr %s252, 256
        %s254 = scalar_lea.vmem [#allocation2], %s253
        // Predicated region
        $region41: #{tpu_custom_call.1} parent=39 // pred_check
          %p255 = pneg %p45
        $region42: #{tpu_custom_call.1} parent=39 // pred_check_branch
          %257 = sbr.rel (%p255) target = $region44
        $region43: #{tpu_custom_call.1} parent=39 // pred_region
          %258 = dma.done %s251, 4096
        $region44: #{tpu_custom_call.1} parent=39 // pred_fallthru
          _
        // Predicated region
        $region45: #{tpu_custom_call.1} parent=39 // pred_check
          %p259 = pneg %p66
        $region46: #{tpu_custom_call.1} parent=39 // pred_check_branch
          %261 = sbr.rel (%p259) target = $region48
        $region47: #{tpu_custom_call.1} parent=39 // pred_region
          %262 = dma.done [#allocation6], 1024
        $region48: #{tpu_custom_call.1} parent=39 // pred_fallthru
          _
        // Predicated region
        $region49: #{tpu_custom_call.1} parent=39 // pred_check
          %p263 = pneg %p87
        $region50: #{tpu_custom_call.1} parent=39 // pred_check_branch
          %265 = sbr.rel (%p263) target = $region52
        $region51: #{tpu_custom_call.1} parent=39 // pred_region
          %266 = dma.done [#allocation6], 16
        $region52: #{tpu_custom_call.1} parent=39 // pred_fallthru
          _
        // Predicated region
        $region53: #{tpu_custom_call.1} parent=39 // pred_check
          %p267 = pneg %p108
        $region54: #{tpu_custom_call.1} parent=39 // pred_check_branch
          %269 = sbr.rel (%p267) target = $region56
        $region55: #{tpu_custom_call.1} parent=39 // pred_region
          %270 = dma.done [#allocation9], 1024
        $region56: #{tpu_custom_call.1} parent=39 // pred_fallthru
          _
        // Predicated region
        $region57: #{tpu_custom_call.1} parent=39 // pred_check
          %p271 = pneg %p129
        $region58: #{tpu_custom_call.1} parent=39 // pred_check_branch
          %273 = sbr.rel (%p271) target = $region60
        $region59: #{tpu_custom_call.1} parent=39 // pred_region
          %274 = dma.done [#allocation9], 16
        $region60: #{tpu_custom_call.1} parent=39 // pred_fallthru
          _
        %s275 = sand.u32 %s32, 1
        %s276 = scalar_lea.sflag [#allocation3], %s275
        %s277 = sand.u32 %s32, 1
        %s278 = smul.addr %s277, 256
        %s279 = scalar_lea.vmem [#allocation2], %s278
        %p280 = pneg %p45
        %p281 = pneg %p42
        %p282 = pneg %p66
        %p283 = pneg %p63
        %p284 = pneg %p87
        %p285 = pneg %p84
        %p286 = pneg %p108
        %p287 = pneg %p105
        %p288 = pneg %p129
        %p289 = pneg %p126
        %p290 = pneg %p155
        %p291 = pneg %p152
        %s292 = sand.u32 %s142, 1
        %s293 = scalar_lea.sflag [#allocation4], %s292
        %s294 = sand.u32 %s142, 1
        %s295 = smul.addr %s294, 256
        %s296 = scalar_lea.vmem [#allocation11], %s295
        %s297 = smul.u32 32, %s24
        %s298 = smul.u32 32, %s24
        %v300 = vld [vmem:[%s254] sm:$0xff]
        %v301 = vld [vmem:[%s254 + $0x8] sm:$0xff]
        %v302 = vld [vmem:[%s254 + $0x10] sm:$0xff]
        %v303 = vld [vmem:[%s254 + $0x18] sm:$0xff]
        %v304 = vld [vmem:[%s254 + $0x20] sm:$0xff]
        %v305 = vld [vmem:[%s254 + $0x28] sm:$0xff]
        %v306 = vld [vmem:[%s254 + $0x30] sm:$0xff]
        %v307 = vld [vmem:[%s254 + $0x38] sm:$0xff]
        %v308 = vld [vmem:[%s254 + $0x40] sm:$0xff]
        %v309 = vld [vmem:[%s254 + $0x48] sm:$0xff]
        %v310 = vld [vmem:[%s254 + $0x50] sm:$0xff]
        %v311 = vld [vmem:[%s254 + $0x58] sm:$0xff]
        %v312 = vld [vmem:[%s254 + $0x60] sm:$0xff]
        %v313 = vld [vmem:[%s254 + $0x68] sm:$0xff]
        %v314 = vld [vmem:[%s254 + $0x70] sm:$0xff]
        %v315 = vld [vmem:[%s254 + $0x78] sm:$0xff]
        %v316 = vld [vmem:[%s254 + $0x80] sm:$0xff]
        %v317 = vld [vmem:[%s254 + $0x88] sm:$0xff]
        %v318 = vld [vmem:[%s254 + $0x90] sm:$0xff]
        %v319 = vld [vmem:[%s254 + $0x98] sm:$0xff]
        %v320 = vld [vmem:[%s254 + $0xa0] sm:$0xff]
        %v321 = vld [vmem:[%s254 + $0xa8] sm:$0xff]
        %v322 = vld [vmem:[%s254 + $0xb0] sm:$0xff]
        %v323 = vld [vmem:[%s254 + $0xb8] sm:$0xff]
        %v324 = vld [vmem:[%s254 + $0xc0] sm:$0xff]
        %v325 = vld [vmem:[%s254 + $0xc8] sm:$0xff]
        %v326 = vld [vmem:[%s254 + $0xd0] sm:$0xff]
        %v327 = vld [vmem:[%s254 + $0xd8] sm:$0xff]
        %v328 = vld [vmem:[%s254 + $0xe0] sm:$0xff]
        %v329 = vld [vmem:[%s254 + $0xe8] sm:$0xff]
        %v330 = vld [vmem:[%s254 + $0xf0] sm:$0xff]
        %v331 = vld [vmem:[%s254 + $0xf8] sm:$0xff]
        %v332 = vpack.c.bf16 %v301, %v300
        %v333 = vpack.c.bf16 %v303, %v302
        %v334 = vpack.c.bf16 %v305, %v304
        %v335 = vpack.c.bf16 %v307, %v306
        %v336 = vpack.c.bf16 %v309, %v308
        %v337 = vpack.c.bf16 %v311, %v310
        %v338 = vpack.c.bf16 %v313, %v312
        %v339 = vpack.c.bf16 %v315, %v314
        %v340 = vpack.c.bf16 %v317, %v316
        %v341 = vpack.c.bf16 %v319, %v318
        %v342 = vpack.c.bf16 %v321, %v320
        %v343 = vpack.c.bf16 %v323, %v322
        %v344 = vpack.c.bf16 %v325, %v324
        %v345 = vpack.c.bf16 %v327, %v326
        %v346 = vpack.c.bf16 %v329, %v328
        %v347 = vpack.c.bf16 %v331, %v330
        %v348 = vld [vmem:[#allocation5] sm:$0xf]
        %v349 = vld [vmem:[#allocation5 + $0x4] sm:$0xf]
        %v350 = vld [vmem:[#allocation5 + $0x8] sm:$0xf]
        %v351 = vld [vmem:[#allocation5 + $0xc] sm:$0xf]
        %v352 = vld [vmem:[#allocation5 + $0x10] sm:$0xf]
        %v353 = vld [vmem:[#allocation5 + $0x14] sm:$0xf]
        %v354 = vld [vmem:[#allocation5 + $0x18] sm:$0xf]
        %v355 = vld [vmem:[#allocation5 + $0x1c] sm:$0xf]
        %v356 = vld [vmem:[#allocation5 + $0x20] sm:$0xf]
        %v357 = vld [vmem:[#allocation5 + $0x24] sm:$0xf]
        %v358 = vld [vmem:[#allocation5 + $0x28] sm:$0xf]
        %v359 = vld [vmem:[#allocation5 + $0x2c] sm:$0xf]
        %v360 = vld [vmem:[#allocation5 + $0x30] sm:$0xf]
        %v361 = vld [vmem:[#allocation5 + $0x34] sm:$0xf]
        %v362 = vld [vmem:[#allocation5 + $0x38] sm:$0xf]
        %v363 = vld [vmem:[#allocation5 + $0x3c] sm:$0xf]
        %v364 = vld [vmem:[#allocation7] sm:$0x1]
        %v366 = vlaneseq
        %v367 = vshrl.u32 %v366, 7
        %v368 = vsub.s32 0, %v367
        %v369 = vrot.slane %v364, %v368
        %v387 = vunpack.c.l.b16 %v348
        %v388 = vunpack.c.l.b16 %v349
        %v389 = vunpack.c.l.b16 %v350
        %v390 = vunpack.c.l.b16 %v351
        %v391 = vunpack.c.l.b16 %v352
        %v392 = vunpack.c.l.b16 %v353
        %v393 = vunpack.c.l.b16 %v354
        %v394 = vunpack.c.l.b16 %v355
        %v395 = vunpack.c.l.b16 %v356
        %v396 = vunpack.c.l.b16 %v357
        %v397 = vunpack.c.l.b16 %v358
        %v398 = vunpack.c.l.b16 %v359
        %v399 = vunpack.c.l.b16 %v360
        %v400 = vunpack.c.l.b16 %v361
        %v401 = vunpack.c.l.b16 %v362
        %v402 = vunpack.c.l.b16 %v363
        %v403 = vpack.c.b16 %v388, %v387
        %v404 = vpack.c.b16 %v390, %v389
        %v405 = vpack.c.b16 %v392, %v391
        %v406 = vpack.c.b16 %v394, %v393
        %v407 = vpack.c.b16 %v396, %v395
        %v408 = vpack.c.b16 %v398, %v397
        %v409 = vpack.c.b16 %v400, %v399
        %v410 = vpack.c.b16 %v402, %v401
        %419 = vmatprep.subr.bf16.mxu0 0
        %420 = vmatpush1.bf16.msra.mxu0 %v403
        %421 = vmatprep.subr.bf16.mxu0 0
        %422 = vmatpush1.bf16.msra.mxu0 %v404
        %423 = vmatprep.subr.bf16.mxu0 0
        %424 = vmatpush1.bf16.msra.mxu0 %v405
        %425 = vmatprep.subr.bf16.mxu0 0
        %426 = vmatpush1.bf16.msra.mxu0 %v406
        %427 = vmatprep.subr.bf16.mxu0 0
        %428 = vmatpush1.bf16.msra.mxu0 %v407
        %429 = vmatprep.subr.bf16.mxu0 0
        %430 = vmatpush1.bf16.msra.mxu0 %v408
        %431 = vmatprep.subr.bf16.mxu0 0
        %432 = vmatpush1.bf16.msra.mxu0 %v409
        %433 = vmatprep.subr.bf16.mxu0 0
        %434 = vmatpush1.bf16.msra.mxu0 %v410
        %435 = vmatprep.subr.bf16.mxu0 0
        %436 = vmatpush1.bf16.msra.mxu0 0
        %437 = vmatprep.subr.bf16.mxu0 0
        %438 = vmatpush1.bf16.msra.mxu0 0
        %439 = vmatprep.subr.bf16.mxu0 0
        %440 = vmatpush1.bf16.msra.mxu0 0
        %441 = vmatprep.subr.bf16.mxu0 0
        %442 = vmatpush1.bf16.msra.mxu0 0
        %443 = vmatprep.subr.bf16.mxu0 0
        %444 = vmatpush1.bf16.msra.mxu0 0
        %445 = vmatprep.subr.bf16.mxu0 0
        %446 = vmatpush1.bf16.msra.mxu0 0
        %447 = vmatprep.subr.bf16.mxu0 0
        %448 = vmatpush1.bf16.msra.mxu0 0
        %449 = vmatprep.subr.bf16.mxu0 0
        %450 = vmatpush1.bf16.msra.mxu0 0
        %451 = vmatprep.mubr.bf16.mxu0 0
        %452 = vmatmul.mubr.bf16.gmra.mrb[0].mxu0 %v332
        %v453 = vpop.f32.mrb[0].mxu0
        %v454 = vadd.f32 %v369, %v453
        %v455 = vpop.f32.mrb[0].mxu0
        %v456 = vpop.f32.mrb[0].mxu0
        %v457 = vadd.f32 %v369, %v456
        %v458 = vpop.f32.mrb[0].mxu0
        %459 = vmatprep.mubr.bf16.mxu0 0
        %460 = vmatmul.mubr.bf16.gmra.mrb[0].mxu0 %v333
        %v461 = vpop.f32.mrb[0].mxu0
        %v462 = vadd.f32 %v369, %v461
        %v463 = vpop.f32.mrb[0].mxu0
        %v464 = vpop.f32.mrb[0].mxu0
        %v465 = vadd.f32 %v369, %v464
        %v466 = vpop.f32.mrb[0].mxu0
        %467 = vmatprep.mubr.bf16.mxu0 0
        %468 = vmatmul.mubr.bf16.gmra.mrb[0].mxu0 %v334
        %v469 = vpop.f32.mrb[0].mxu0
        %v470 = vadd.f32 %v369, %v469
        %v471 = vpop.f32.mrb[0].mxu0
        %v472 = vpop.f32.mrb[0].mxu0
        %v473 = vadd.f32 %v369, %v472
        %v474 = vpop.f32.mrb[0].mxu0
        %475 = vmatprep.mubr.bf16.mxu0 0
        %476 = vmatmul.mubr.bf16.gmra.mrb[0].mxu0 %v335
        %v477 = vpop.f32.mrb[0].mxu0
        %v478 = vadd.f32 %v369, %v477
        %v479 = vpop.f32.mrb[0].mxu0
        %v480 = vpop.f32.mrb[0].mxu0
        %v481 = vadd.f32 %v369, %v480
        %v482 = vpop.f32.mrb[0].mxu0
        %483 = vmatprep.mubr.bf16.mxu0 0
        %484 = vmatmul.mubr.bf16.gmra.mrb[0].mxu0 %v336
        %v485 = vpop.f32.mrb[0].mxu0
        %v486 = vadd.f32 %v369, %v485
        %v487 = vpop.f32.mrb[0].mxu0
        %v488 = vpop.f32.mrb[0].mxu0
        %v489 = vadd.f32 %v369, %v488
        %v490 = vpop.f32.mrb[0].mxu0
        %491 = vmatprep.mubr.bf16.mxu0 0
        %492 = vmatmul.mubr.bf16.gmra.mrb[0].mxu0 %v337
        %v493 = vpop.f32.mrb[0].mxu0
        %v494 = vadd.f32 %v369, %v493
        %v495 = vpop.f32.mrb[0].mxu0
        %v496 = vpop.f32.mrb[0].mxu0
        %v497 = vadd.f32 %v369, %v496
        %v498 = vpop.f32.mrb[0].mxu0
        %499 = vmatprep.mubr.bf16.mxu0 0
        %500 = vmatmul.mubr.bf16.gmra.mrb[0].mxu0 %v338
        %v501 = vpop.f32.mrb[0].mxu0
        %v502 = vadd.f32 %v369, %v501
        %v503 = vpop.f32.mrb[0].mxu0
        %v504 = vpop.f32.mrb[0].mxu0
        %v505 = vadd.f32 %v369, %v504
        %v506 = vpop.f32.mrb[0].mxu0
        %507 = vmatprep.mubr.bf16.mxu0 0
        %508 = vmatmul.mubr.bf16.gmra.mrb[0].mxu0 %v339
        %v509 = vpop.f32.mrb[0].mxu0
        %v510 = vadd.f32 %v369, %v509
        %v511 = vpop.f32.mrb[0].mxu0
        %v512 = vpop.f32.mrb[0].mxu0
        %v513 = vadd.f32 %v369, %v512
        %v514 = vpop.f32.mrb[0].mxu0
        %515 = vmatprep.mubr.bf16.mxu0 0
        %516 = vmatmul.mubr.bf16.gmra.mrb[0].mxu0 %v340
        %v517 = vpop.f32.mrb[0].mxu0
        %v518 = vadd.f32 %v369, %v517
        %v519 = vpop.f32.mrb[0].mxu0
        %v520 = vpop.f32.mrb[0].mxu0
        %v521 = vadd.f32 %v369, %v520
        %v522 = vpop.f32.mrb[0].mxu0
        %523 = vmatprep.mubr.bf16.mxu0 0
        %524 = vmatmul.mubr.bf16.gmra.mrb[0].mxu0 %v341
        %v525 = vpop.f32.mrb[0].mxu0
        %v526 = vadd.f32 %v369, %v525
        %v527 = vpop.f32.mrb[0].mxu0
        %v528 = vpop.f32.mrb[0].mxu0
        %v529 = vadd.f32 %v369, %v528
        %v530 = vpop.f32.mrb[0].mxu0
        %531 = vmatprep.mubr.bf16.mxu0 0
        %532 = vmatmul.mubr.bf16.gmra.mrb[0].mxu0 %v342
        %v533 = vpop.f32.mrb[0].mxu0
        %v534 = vadd.f32 %v369, %v533
        %v535 = vpop.f32.mrb[0].mxu0
        %v536 = vpop.f32.mrb[0].mxu0
        %v537 = vadd.f32 %v369, %v536
        %v538 = vpop.f32.mrb[0].mxu0
        %539 = vmatprep.mubr.bf16.mxu0 0
        %540 = vmatmul.mubr.bf16.gmra.mrb[0].mxu0 %v343
        %v541 = vpop.f32.mrb[0].mxu0
        %v542 = vadd.f32 %v369, %v541
        %v543 = vpop.f32.mrb[0].mxu0
        %v544 = vpop.f32.mrb[0].mxu0
        %v545 = vadd.f32 %v369, %v544
        %v546 = vpop.f32.mrb[0].mxu0
        %547 = vmatprep.mubr.bf16.mxu0 0
        %548 = vmatmul.mubr.bf16.gmra.mrb[0].mxu0 %v344
        %v549 = vpop.f32.mrb[0].mxu0
        %v550 = vadd.f32 %v369, %v549
        %v551 = vpop.f32.mrb[0].mxu0
        %v552 = vpop.f32.mrb[0].mxu0
        %v553 = vadd.f32 %v369, %v552
        %v554 = vpop.f32.mrb[0].mxu0
        %555 = vmatprep.mubr.bf16.mxu0 0
        %556 = vmatmul.mubr.bf16.gmra.mrb[0].mxu0 %v345
        %v557 = vpop.f32.mrb[0].mxu0
        %v558 = vadd.f32 %v369, %v557
        %v559 = vpop.f32.mrb[0].mxu0
        %v560 = vpop.f32.mrb[0].mxu0
        %v561 = vadd.f32 %v369, %v560
        %v562 = vpop.f32.mrb[0].mxu0
        %563 = vmatprep.mubr.bf16.mxu0 0
        %564 = vmatmul.mubr.bf16.gmra.mrb[0].mxu0 %v346
        %v565 = vpop.f32.mrb[0].mxu0
        %v566 = vadd.f32 %v369, %v565
        %v567 = vpop.f32.mrb[0].mxu0
        %v568 = vpop.f32.mrb[0].mxu0
        %v569 = vadd.f32 %v369, %v568
        %v570 = vpop.f32.mrb[0].mxu0
        %571 = vmatprep.mubr.bf16.mxu0 0
        %572 = vmatmul.mubr.bf16.gmra.mrb[0].mxu0 %v347
        %v573 = vpop.f32.mrb[0].mxu0
        %v574 = vadd.f32 %v369, %v573
        %v575 = vpop.f32.mrb[0].mxu0
        %v576 = vpop.f32.mrb[0].mxu0
        %v577 = vadd.f32 %v369, %v576
        %v578 = vpop.f32.mrb[0].mxu0
        %579 = vdwg.mxu0
        %v580 = vtanh.pop %v454
        %v581 = vtanh.pop %v457
        %v582 = vtanh.pop %v462
        %v583 = vtanh.pop %v465
        %v584 = vtanh.pop %v470
        %v585 = vtanh.pop %v473
        %v586 = vtanh.pop %v478
        %v587 = vtanh.pop %v481
        %v588 = vtanh.pop %v486
        %v589 = vtanh.pop %v489
        %v590 = vtanh.pop %v494
        %v591 = vtanh.pop %v497
        %v592 = vtanh.pop %v502
        %v593 = vtanh.pop %v505
        %v594 = vtanh.pop %v510
        %v595 = vtanh.pop %v513
        %v596 = vtanh.pop %v518
        %v597 = vtanh.pop %v521
        %v598 = vtanh.pop %v526
        %v599 = vtanh.pop %v529
        %v600 = vtanh.pop %v534
        %v601 = vtanh.pop %v537
        %v602 = vtanh.pop %v542
        %v603 = vtanh.pop %v545
        %v604 = vtanh.pop %v550
        %v605 = vtanh.pop %v553
        %v606 = vtanh.pop %v558
        %v607 = vtanh.pop %v561
        %v608 = vtanh.pop %v566
        %v609 = vtanh.pop %v569
        %v610 = vtanh.pop %v574
        %v611 = vtanh.pop %v577
        %v612 = vpack.c.bf16 %v581, %v580
        %v613 = vpack.c.bf16 %v583, %v582
        %v614 = vpack.c.bf16 %v585, %v584
        %v615 = vpack.c.bf16 %v587, %v586
        %v616 = vpack.c.bf16 %v589, %v588
        %v617 = vpack.c.bf16 %v591, %v590
        %v618 = vpack.c.bf16 %v593, %v592
        %v619 = vpack.c.bf16 %v595, %v594
        %v620 = vpack.c.bf16 %v597, %v596
        %v621 = vpack.c.bf16 %v599, %v598
        %v622 = vpack.c.bf16 %v601, %v600
        %v623 = vpack.c.bf16 %v603, %v602
        %v624 = vpack.c.bf16 %v605, %v604
        %v625 = vpack.c.bf16 %v607, %v606
        %v626 = vpack.c.bf16 %v609, %v608
        %v627 = vpack.c.bf16 %v611, %v610
        %v628 = vld [vmem:[#allocation10] sm:$0x1]
        %v630 = vlaneseq
        %v631 = vshrl.u32 %v630, 7
        %v632 = vsub.s32 0, %v631
        %v633 = vrot.slane %v628, %v632
        %v635 = vadd.f32 %v454, %v633
        %v636 = vadd.f32 %v457, %v633
        %v637 = vadd.f32 %v462, %v633
        %v638 = vadd.f32 %v465, %v633
        %v639 = vadd.f32 %v470, %v633
        %v640 = vadd.f32 %v473, %v633
        %v641 = vadd.f32 %v478, %v633
        %v642 = vadd.f32 %v481, %v633
        %v643 = vadd.f32 %v486, %v633
        %v644 = vadd.f32 %v489, %v633
        %v645 = vadd.f32 %v494, %v633
        %v646 = vadd.f32 %v497, %v633
        %v647 = vadd.f32 %v502, %v633
        %v648 = vadd.f32 %v505, %v633
        %v649 = vadd.f32 %v510, %v633
        %v650 = vadd.f32 %v513, %v633
        %v651 = vadd.f32 %v518, %v633
        %v652 = vadd.f32 %v521, %v633
        %v653 = vadd.f32 %v526, %v633
        %v654 = vadd.f32 %v529, %v633
        %v655 = vadd.f32 %v534, %v633
        %v656 = vadd.f32 %v537, %v633
        %v657 = vadd.f32 %v542, %v633
        %v658 = vadd.f32 %v545, %v633
        %v659 = vadd.f32 %v550, %v633
        %v660 = vadd.f32 %v553, %v633
        %v661 = vadd.f32 %v558, %v633
        %v662 = vadd.f32 %v561, %v633
        %v663 = vadd.f32 %v566, %v633
        %v664 = vadd.f32 %v569, %v633
        %v665 = vadd.f32 %v574, %v633
        %v666 = vadd.f32 %v577, %v633
        %v667 = vld [vmem:[#allocation8] sm:$0xf]
        %v668 = vld [vmem:[#allocation8 + $0x4] sm:$0xf]
        %v669 = vld [vmem:[#allocation8 + $0x8] sm:$0xf]
        %v670 = vld [vmem:[#allocation8 + $0xc] sm:$0xf]
        %v671 = vld [vmem:[#allocation8 + $0x10] sm:$0xf]
        %v672 = vld [vmem:[#allocation8 + $0x14] sm:$0xf]
        %v673 = vld [vmem:[#allocation8 + $0x18] sm:$0xf]
        %v674 = vld [vmem:[#allocation8 + $0x1c] sm:$0xf]
        %v675 = vld [vmem:[#allocation8 + $0x20] sm:$0xf]
        %v676 = vld [vmem:[#allocation8 + $0x24] sm:$0xf]
        %v677 = vld [vmem:[#allocation8 + $0x28] sm:$0xf]
        %v678 = vld [vmem:[#allocation8 + $0x2c] sm:$0xf]
        %v679 = vld [vmem:[#allocation8 + $0x30] sm:$0xf]
        %v680 = vld [vmem:[#allocation8 + $0x34] sm:$0xf]
        %v681 = vld [vmem:[#allocation8 + $0x38] sm:$0xf]
        %v682 = vld [vmem:[#allocation8 + $0x3c] sm:$0xf]
        %v699 = vunpack.c.l.b16 %v667
        %v700 = vunpack.c.l.b16 %v668
        %v701 = vunpack.c.l.b16 %v669
        %v702 = vunpack.c.l.b16 %v670
        %v703 = vunpack.c.l.b16 %v671
        %v704 = vunpack.c.l.b16 %v672
        %v705 = vunpack.c.l.b16 %v673
        %v706 = vunpack.c.l.b16 %v674
        %v707 = vunpack.c.l.b16 %v675
        %v708 = vunpack.c.l.b16 %v676
        %v709 = vunpack.c.l.b16 %v677
        %v710 = vunpack.c.l.b16 %v678
        %v711 = vunpack.c.l.b16 %v679
        %v712 = vunpack.c.l.b16 %v680
        %v713 = vunpack.c.l.b16 %v681
        %v714 = vunpack.c.l.b16 %v682
        %v715 = vpack.c.b16 %v700, %v699
        %v716 = vpack.c.b16 %v702, %v701
        %v717 = vpack.c.b16 %v704, %v703
        %v718 = vpack.c.b16 %v706, %v705
        %v719 = vpack.c.b16 %v708, %v707
        %v720 = vpack.c.b16 %v710, %v709
        %v721 = vpack.c.b16 %v712, %v711
        %v722 = vpack.c.b16 %v714, %v713
        %731 = vmatprep.subr.bf16.mxu0 0
        %732 = vmatpush1.bf16.msra.mxu0 %v715
        %733 = vmatprep.subr.bf16.mxu0 0
        %734 = vmatpush1.bf16.msra.mxu0 %v716
        %735 = vmatprep.subr.bf16.mxu0 0
        %736 = vmatpush1.bf16.msra.mxu0 %v717
        %737 = vmatprep.subr.bf16.mxu0 0
        %738 = vmatpush1.bf16.msra.mxu0 %v718
        %739 = vmatprep.subr.bf16.mxu0 0
        %740 = vmatpush1.bf16.msra.mxu0 %v719
        %741 = vmatprep.subr.bf16.mxu0 0
        %742 = vmatpush1.bf16.msra.mxu0 %v720
        %743 = vmatprep.subr.bf16.mxu0 0
        %744 = vmatpush1.bf16.msra.mxu0 %v721
        %745 = vmatprep.subr.bf16.mxu0 0
        %746 = vmatpush1.bf16.msra.mxu0 %v722
        %747 = vmatprep.subr.bf16.mxu0 0
        %748 = vmatpush1.bf16.msra.mxu0 0
        %749 = vmatprep.subr.bf16.mxu0 0
        %750 = vmatpush1.bf16.msra.mxu0 0
        %751 = vmatprep.subr.bf16.mxu0 0
        %752 = vmatpush1.bf16.msra.mxu0 0
        %753 = vmatprep.subr.bf16.mxu0 0
        %754 = vmatpush1.bf16.msra.mxu0 0
        %755 = vmatprep.subr.bf16.mxu0 0
        %756 = vmatpush1.bf16.msra.mxu0 0
        %757 = vmatprep.subr.bf16.mxu0 0
        %758 = vmatpush1.bf16.msra.mxu0 0
        %759 = vmatprep.subr.bf16.mxu0 0
        %760 = vmatpush1.bf16.msra.mxu0 0
        %761 = vmatprep.subr.bf16.mxu0 0
        %762 = vmatpush1.bf16.msra.mxu0 0
        %763 = vmatprep.mubr.bf16.mxu0 0
        %764 = vmatmul.mubr.bf16.gmra.mrb[0].mxu0 %v612
        %v765 = vpop.f32.mrb[0].mxu0
        %v766 = vadd.f32 0.0, %v765
        %v767 = vpop.f32.mrb[0].mxu0
        %v768 = vpop.f32.mrb[0].mxu0
        %v769 = vadd.f32 0.0, %v768
        %v770 = vpop.f32.mrb[0].mxu0
        %771 = vmatprep.mubr.bf16.mxu0 0
        %772 = vmatmul.mubr.bf16.gmra.mrb[0].mxu0 %v613
        %v773 = vpop.f32.mrb[0].mxu0
        %v774 = vadd.f32 0.0, %v773
        %v775 = vpop.f32.mrb[0].mxu0
        %v776 = vpop.f32.mrb[0].mxu0
        %v777 = vadd.f32 0.0, %v776
        %v778 = vpop.f32.mrb[0].mxu0
        %779 = vmatprep.mubr.bf16.mxu0 0
        %780 = vmatmul.mubr.bf16.gmra.mrb[0].mxu0 %v614
        %v781 = vpop.f32.mrb[0].mxu0
        %v782 = vadd.f32 0.0, %v781
        %v783 = vpop.f32.mrb[0].mxu0
        %v784 = vpop.f32.mrb[0].mxu0
        %v785 = vadd.f32 0.0, %v784
        %v786 = vpop.f32.mrb[0].mxu0
        %787 = vmatprep.mubr.bf16.mxu0 0
        %788 = vmatmul.mubr.bf16.gmra.mrb[0].mxu0 %v615
        %v789 = vpop.f32.mrb[0].mxu0
        %v790 = vadd.f32 0.0, %v789
        %v791 = vpop.f32.mrb[0].mxu0
        %v792 = vpop.f32.mrb[0].mxu0
        %v793 = vadd.f32 0.0, %v792
        %v794 = vpop.f32.mrb[0].mxu0
        %795 = vmatprep.mubr.bf16.mxu0 0
        %796 = vmatmul.mubr.bf16.gmra.mrb[0].mxu0 %v616
        %v797 = vpop.f32.mrb[0].mxu0
        %v798 = vadd.f32 0.0, %v797
        %v799 = vpop.f32.mrb[0].mxu0
        %v800 = vpop.f32.mrb[0].mxu0
        %v801 = vadd.f32 0.0, %v800
        %v802 = vpop.f32.mrb[0].mxu0
        %803 = vmatprep.mubr.bf16.mxu0 0
        %804 = vmatmul.mubr.bf16.gmra.mrb[0].mxu0 %v617
        %v805 = vpop.f32.mrb[0].mxu0
        %v806 = vadd.f32 0.0, %v805
        %v807 = vpop.f32.mrb[0].mxu0
        %v808 = vpop.f32.mrb[0].mxu0
        %v809 = vadd.f32 0.0, %v808
        %v810 = vpop.f32.mrb[0].mxu0
        %811 = vmatprep.mubr.bf16.mxu0 0
        %812 = vmatmul.mubr.bf16.gmra.mrb[0].mxu0 %v618
        %v813 = vpop.f32.mrb[0].mxu0
        %v814 = vadd.f32 0.0, %v813
        %v815 = vpop.f32.mrb[0].mxu0
        %v816 = vpop.f32.mrb[0].mxu0
        %v817 = vadd.f32 0.0, %v816
        %v818 = vpop.f32.mrb[0].mxu0
        %819 = vmatprep.mubr.bf16.mxu0 0
        %820 = vmatmul.mubr.bf16.gmra.mrb[0].mxu0 %v619
        %v821 = vpop.f32.mrb[0].mxu0
        %v822 = vadd.f32 0.0, %v821
        %v823 = vpop.f32.mrb[0].mxu0
        %v824 = vpop.f32.mrb[0].mxu0
        %v825 = vadd.f32 0.0, %v824
        %v826 = vpop.f32.mrb[0].mxu0
        %827 = vmatprep.mubr.bf16.mxu0 0
        %828 = vmatmul.mubr.bf16.gmra.mrb[0].mxu0 %v620
        %v829 = vpop.f32.mrb[0].mxu0
        %v830 = vadd.f32 0.0, %v829
        %v831 = vpop.f32.mrb[0].mxu0
        %v832 = vpop.f32.mrb[0].mxu0
        %v833 = vadd.f32 0.0, %v832
        %v834 = vpop.f32.mrb[0].mxu0
        %835 = vmatprep.mubr.bf16.mxu0 0
        %836 = vmatmul.mubr.bf16.gmra.mrb[0].mxu0 %v621
        %v837 = vpop.f32.mrb[0].mxu0
        %v838 = vadd.f32 0.0, %v837
        %v839 = vpop.f32.mrb[0].mxu0
        %v840 = vpop.f32.mrb[0].mxu0
        %v841 = vadd.f32 0.0, %v840
        %v842 = vpop.f32.mrb[0].mxu0
        %843 = vmatprep.mubr.bf16.mxu0 0
        %844 = vmatmul.mubr.bf16.gmra.mrb[0].mxu0 %v622
        %v845 = vpop.f32.mrb[0].mxu0
        %v846 = vadd.f32 0.0, %v845
        %v847 = vpop.f32.mrb[0].mxu0
        %v848 = vpop.f32.mrb[0].mxu0
        %v849 = vadd.f32 0.0, %v848
        %v850 = vpop.f32.mrb[0].mxu0
        %851 = vmatprep.mubr.bf16.mxu0 0
        %852 = vmatmul.mubr.bf16.gmra.mrb[0].mxu0 %v623
        %v853 = vpop.f32.mrb[0].mxu0
        %v854 = vadd.f32 0.0, %v853
        %v855 = vpop.f32.mrb[0].mxu0
        %v856 = vpop.f32.mrb[0].mxu0
        %v857 = vadd.f32 0.0, %v856
        %v858 = vpop.f32.mrb[0].mxu0
        %859 = vmatprep.mubr.bf16.mxu0 0
        %860 = vmatmul.mubr.bf16.gmra.mrb[0].mxu0 %v624
        %v861 = vpop.f32.mrb[0].mxu0
        %v862 = vadd.f32 0.0, %v861
        %v863 = vpop.f32.mrb[0].mxu0
        %v864 = vpop.f32.mrb[0].mxu0
        %v865 = vadd.f32 0.0, %v864
        %v866 = vpop.f32.mrb[0].mxu0
        %867 = vmatprep.mubr.bf16.mxu0 0
        %868 = vmatmul.mubr.bf16.gmra.mrb[0].mxu0 %v625
        %v869 = vpop.f32.mrb[0].mxu0
        %v870 = vadd.f32 0.0, %v869
        %v871 = vpop.f32.mrb[0].mxu0
        %v872 = vpop.f32.mrb[0].mxu0
        %v873 = vadd.f32 0.0, %v872
        %v874 = vpop.f32.mrb[0].mxu0
        %875 = vmatprep.mubr.bf16.mxu0 0
        %876 = vmatmul.mubr.bf16.gmra.mrb[0].mxu0 %v626
        %v877 = vpop.f32.mrb[0].mxu0
        %v878 = vadd.f32 0.0, %v877
        %v879 = vpop.f32.mrb[0].mxu0
        %v880 = vpop.f32.mrb[0].mxu0
        %v881 = vadd.f32 0.0, %v880
        %v882 = vpop.f32.mrb[0].mxu0
        %883 = vmatprep.mubr.bf16.mxu0 0
        %884 = vmatmul.mubr.bf16.gmra.mrb[0].mxu0 %v627
        %v885 = vpop.f32.mrb[0].mxu0
        %v886 = vadd.f32 0.0, %v885
        %v887 = vpop.f32.mrb[0].mxu0
        %v888 = vpop.f32.mrb[0].mxu0
        %v889 = vadd.f32 0.0, %v888
        %v890 = vpop.f32.mrb[0].mxu0
        %891 = vdwg.mxu0
        %v892 = vadd.f32 %v635, %v766
        %v893 = vadd.f32 %v636, %v769
        %v894 = vadd.f32 %v637, %v774
        %v895 = vadd.f32 %v638, %v777
        %v896 = vadd.f32 %v639, %v782
        %v897 = vadd.f32 %v640, %v785
        %v898 = vadd.f32 %v641, %v790
        %v899 = vadd.f32 %v642, %v793
        %v900 = vadd.f32 %v643, %v798
        %v901 = vadd.f32 %v644, %v801
        %v902 = vadd.f32 %v645, %v806
        %v903 = vadd.f32 %v646, %v809
        %v904 = vadd.f32 %v647, %v814
        %v905 = vadd.f32 %v648, %v817
        %v906 = vadd.f32 %v649, %v822
        %v907 = vadd.f32 %v650, %v825
        %v908 = vadd.f32 %v651, %v830
        %v909 = vadd.f32 %v652, %v833
        %v910 = vadd.f32 %v653, %v838
        %v911 = vadd.f32 %v654, %v841
        %v912 = vadd.f32 %v655, %v846
        %v913 = vadd.f32 %v656, %v849
        %v914 = vadd.f32 %v657, %v854
        %v915 = vadd.f32 %v658, %v857
        %v916 = vadd.f32 %v659, %v862
        %v917 = vadd.f32 %v660, %v865
        %v918 = vadd.f32 %v661, %v870
        %v919 = vadd.f32 %v662, %v873
        %v920 = vadd.f32 %v663, %v878
        %v921 = vadd.f32 %v664, %v881
        %v922 = vadd.f32 %v665, %v886
        %v923 = vadd.f32 %v666, %v889
        %924 = vst [vmem:[%s296] sm:$0xff] %v892
        %925 = vst [vmem:[%s296 + $0x8] sm:$0xff] %v893
        %926 = vst [vmem:[%s296 + $0x10] sm:$0xff] %v894
        %927 = vst [vmem:[%s296 + $0x18] sm:$0xff] %v895
        %928 = vst [vmem:[%s296 + $0x20] sm:$0xff] %v896
        %929 = vst [vmem:[%s296 + $0x28] sm:$0xff] %v897
        %930 = vst [vmem:[%s296 + $0x30] sm:$0xff] %v898
        %931 = vst [vmem:[%s296 + $0x38] sm:$0xff] %v899
        %932 = vst [vmem:[%s296 + $0x40] sm:$0xff] %v900
        %933 = vst [vmem:[%s296 + $0x48] sm:$0xff] %v901
        %934 = vst [vmem:[%s296 + $0x50] sm:$0xff] %v902
        %935 = vst [vmem:[%s296 + $0x58] sm:$0xff] %v903
        %936 = vst [vmem:[%s296 + $0x60] sm:$0xff] %v904
        %937 = vst [vmem:[%s296 + $0x68] sm:$0xff] %v905
        %938 = vst [vmem:[%s296 + $0x70] sm:$0xff] %v906
        %939 = vst [vmem:[%s296 + $0x78] sm:$0xff] %v907
        %940 = vst [vmem:[%s296 + $0x80] sm:$0xff] %v908
        %941 = vst [vmem:[%s296 + $0x88] sm:$0xff] %v909
        %942 = vst [vmem:[%s296 + $0x90] sm:$0xff] %v910
        %943 = vst [vmem:[%s296 + $0x98] sm:$0xff] %v911
        %944 = vst [vmem:[%s296 + $0xa0] sm:$0xff] %v912
        %945 = vst [vmem:[%s296 + $0xa8] sm:$0xff] %v913
        %946 = vst [vmem:[%s296 + $0xb0] sm:$0xff] %v914
        %947 = vst [vmem:[%s296 + $0xb8] sm:$0xff] %v915
        %948 = vst [vmem:[%s296 + $0xc0] sm:$0xff] %v916
        %949 = vst [vmem:[%s296 + $0xc8] sm:$0xff] %v917
        %950 = vst [vmem:[%s296 + $0xd0] sm:$0xff] %v918
        %951 = vst [vmem:[%s296 + $0xd8] sm:$0xff] %v919
        %952 = vst [vmem:[%s296 + $0xe0] sm:$0xff] %v920
        %953 = vst [vmem:[%s296 + $0xe8] sm:$0xff] %v921
        %954 = vst [vmem:[%s296 + $0xf0] sm:$0xff] %v922
        %955 = vst [vmem:[%s296 + $0xf8] sm:$0xff] %v923
        %s956 = sand.u32 %s142, 1
        %s957 = scalar_lea.sflag [#allocation4], %s956
        %s958 = sand.u32 %s142, 1
        %s959 = smul.addr %s958, 256
        %s960 = scalar_lea.vmem [#allocation11], %s959
        // Predicated region
        $region61: #{tpu_custom_call.1} parent=39 // pred_check
          %p961 = pneg %p152
        $region62: #{tpu_custom_call.1} parent=39 // pred_check_branch
          %963 = sbr.rel (%p961) target = $region64
        $region63: #{tpu_custom_call.1} parent=39 // pred_region
          %s964 = smul.u32 32, %s24
          %s966 = ssub.s32 4096, 4096
          %967 = vsyncadd %s957, %s966
          %s968 = smul.addr %s964, 128
          %s969 = scalar_lea.hbm %s5, %s968
          %s970 = sshll.u32 %s960, 4
          %s971 = int_to_ptr.vmem [resolvable:$true] %s970
          %976 = dma.vmem_to_hbm [thread:$0]  %s971, 4096, %s969, %s957, 128, 128, 8
        $region64: #{tpu_custom_call.1} parent=39 // pred_fallthru
          _
      $region40: #{tpu_custom_call.1} parent=5 // pred_fallthru
        _
      %p977 = scmp.le.s32.totalorder 2, %s19
      // Predicated region
      $region65: #{tpu_custom_call.1} parent=5 // pred_check
        %p978 = pneg %p977
      $region66: #{tpu_custom_call.1} parent=5 // pred_check_branch
        %980 = sbr.rel (%p978) target = $region68
      $region67: #{tpu_custom_call.1} parent=5 // pred_region
        %s981 = ssub.s32 %s19, 2
        // Predicated region
        $region69: #{tpu_custom_call.1} parent=67 // pred_check
          %p982 = pneg %p158
        $region70: #{tpu_custom_call.1} parent=67 // pred_check_branch
          %984 = sbr.rel (%p982) target = $region72
        $region71: #{tpu_custom_call.1} parent=67 // pred_region
          %s985 = sand.u32 %s143, 1
          %s986 = scalar_lea.sflag [#allocation4], %s985
          %s987 = sand.u32 %s143, 1
          %s988 = smul.addr %s987, 256
          %s989 = scalar_lea.vmem [#allocation11], %s988
          %990 = dma.done %s986, 4096
        $region72: #{tpu_custom_call.1} parent=67 // pred_fallthru
          _
      $region68: #{tpu_custom_call.1} parent=5 // pred_fallthru
        _
    $region6: #{tpu_custom_call.1} parent=1 // loop_footer
      %s23 = sadd.s32 1, %s19
    $region7: #{tpu_custom_call.1} parent=1 // loop_footer_branch
      %18 = sbr.rel target = $region3
    $region8: #{tpu_custom_call.1} parent=1 // loop_exit
      _
    %991 = vsyncpa [#allocation3], 1
    %s992 = scalar_lea.sflag [#allocation3], 1
    %993 = vsyncpa %s992, 1
    %994 = vsyncpa [#allocation6], 1
    %995 = vsyncpa [#allocation9], 1
    %996 = vsyncpa [#allocation4], 1
    %s997 = scalar_lea.sflag [#allocation4], 1
    %998 = vsyncpa %s997, 1

</llo_original>
